<compile_context>
chip_gen: v6e
topology: v6e:2x2x1
jax: 0.10.0
libtpu: 0.0.40
codegen_flags: <defaults>
</compile_context>

<pallas_src>
import jax
import jax.numpy as jnp
from jax.experimental import pallas as pl
from jax.experimental.pallas import tpu as pltpu

_LANE = 128  # TPU lane width; last-dim tiles must be lane-dense for fast stores.


def _round_up(n: int, m: int) -> int:
    return ((n + m - 1) // m) * m


def _pad_to(arr, axis, target):
    """Zero-pad `arr` along `axis` up to length `target`."""
    size = arr.shape[axis]
    if size == target:
        return arr
    widths = [(0, 0)] * arr.ndim
    widths[axis] = (0, target - size)
    return jnp.pad(arr, widths)


def _ffn_kernel(x_ref, w1_ref, b1_ref, w2_ref, b2_ref, o_ref, acc_ref):
    """Grid = (batch tiles [parallel], hidden tiles [arbitrary / reduction]).

    Per step:  h_k = relu(x_tile @ W1[:, k-slice] + b1[k-slice])
               acc += h_k @ W2[k-slice, :]
    Output (+ b2) is written once on the last hidden step.
    """
    k = pl.program_id(1)

    @pl.when(k == 0)
    def _init():
        acc_ref[...] = jnp.zeros_like(acc_ref)

    # First linear (this hidden slice) on the MXU, f32 accumulation.
    h = jnp.dot(x_ref[...], w1_ref[...], preferred_element_type=jnp.float32)
    h = jnp.maximum(h + b1_ref[...], 0.0)  # bias + ReLU on the f32 activations

    # Second linear (this hidden slice), accumulated into the f32 scratch.
    # (With bf16 weights, h is rounded to bf16 for the MXU; accumulator stays f32.)
    acc_ref[...] += jnp.dot(h.astype(w2_ref.dtype), w2_ref[...],
                            preferred_element_type=jnp.float32)

    @pl.when(k == pl.num_programs(1) - 1)
    def _finalize():
        o_ref[...] = (acc_ref[...] + b2_ref[...]).astype(o_ref.dtype)


def feed_forward_net(x, w1, b1, w2, b2, *, tb=256, th=512, compute_dtype=None):
    """x: [B, input_size]; w1: [input_size, hidden]; b1: [hidden];
    w2: [hidden, num_classes]; b2: [num_classes]. Returns [B, num_classes].

    tb: batch-tile rows per grid step (sweep 128..512 for big batches).
    th: hidden-tile width of the reduction grid axis (multiple of 128).
    compute_dtype: e.g. jnp.bfloat16 to run the MXU at full rate; biases,
    accumulation and the ReLU epilogue stay float32.
    """
    B, in_sz = x.shape
    hidden = w1.shape[1]
    n_cls = w2.shape[1]
    out_dtype = x.dtype

    if compute_dtype is not None:
        x = x.astype(compute_dtype)
        w1 = w1.astype(compute_dtype)
        w2 = w2.astype(compute_dtype)
    # Biases are added on the f32 accumulator -> keep them f32.
    b1 = b1.astype(jnp.float32)
    b2 = b2.astype(jnp.float32)

    sub = 16 if x.dtype == jnp.bfloat16 else 8  # sublane packing granularity

    # --- tile sizes ---------------------------------------------------------
    tb = _round_up(min(tb, _round_up(B, sub)), sub)
    th = _round_up(min(th, _round_up(hidden, _LANE)), _LANE)

    # --- lane-dense padding -------------------------------------------------
    B_p = _round_up(B, tb)
    in_p = _round_up(in_sz, _LANE)
    hid_p = _round_up(hidden, th)
    ncls_p = _round_up(n_cls, _LANE)

    x_p = _pad_to(_pad_to(x, 0, B_p), 1, in_p)
    w1_p = _pad_to(_pad_to(w1, 0, in_p), 1, hid_p)
    b1_p = _pad_to(b1.reshape(1, hidden), 1, hid_p)
    w2_p = _pad_to(_pad_to(w2, 0, hid_p), 1, ncls_p)
    b2_p = _pad_to(b2.reshape(1, n_cls), 1, ncls_p)

    nb = B_p // tb
    nk = hid_p // th

    # --- VMEM budget (double-buffered tiles + f32 accumulator) --------------
    itemsize = jnp.dtype(x_p.dtype).itemsize
    est = (2 * tb * (in_p + ncls_p) * itemsize        # x / out tiles (x2 buffers)
           + 2 * (in_p * th + th * ncls_p) * itemsize  # W1 / W2 tiles (x2 buffers)
           + 2 * 2 * (th + ncls_p) * 4                 # biases
           + tb * ncls_p * 4)                          # accumulator scratch
    vmem_limit = int(min(max(2 * est, 32 * 1024 * 1024), 64 * 1024 * 1024))

    out_p = pl.pallas_call(
        _ffn_kernel,
        out_shape=jax.ShapeDtypeStruct((B_p, ncls_p), out_dtype),
        grid_spec=pltpu.PrefetchScalarGridSpec(
            num_scalar_prefetch=0,
            grid=(nb, nk),
            in_specs=[
                pl.BlockSpec((tb, in_p), lambda i, k: (i, 0)),     # x batch tile
                pl.BlockSpec((in_p, th), lambda i, k: (0, k)),     # W1 hidden slice
                pl.BlockSpec((1, th), lambda i, k: (0, k)),        # b1 hidden slice
                pl.BlockSpec((th, ncls_p), lambda i, k: (k, 0)),   # W2 hidden slice
                pl.BlockSpec((1, ncls_p), lambda i, k: (0, 0)),    # b2
            ],
            out_specs=pl.BlockSpec((tb, ncls_p), lambda i, k: (i, 0)),
            scratch_shapes=[pltpu.VMEM((tb, ncls_p), jnp.float32)],
        ),
        compiler_params=pltpu.CompilerParams(
            # Batch axis shards across TensorCores (v7x megacore); hidden axis
            # is a reduction into the accumulator -> must stay "arbitrary".
            dimension_semantics=("parallel", "arbitrary"),
            vmem_limit_bytes=vmem_limit,
        ),
    )(x_p, w1_p, b1_p, w2_p, b2_p)

    return out_p[:B, :n_cls]


def _reference(x, w1, b1, w2, b2):
    h = jnp.maximum(x @ w1 + b1, 0.0)
    return h @ w2 + b2


if __name__ == "__main__":
    # Small shapes, but deliberately non-multiples of the lane/tile sizes so
    # the padding + multi-step grid (2 batch tiles x 2 hidden tiles) is tested.
    batch = 32
    input_size = 48
    hidden_size = 200
    num_classes = 10

    key = jax.random.PRNGKey(0)
    kx, k1, kb1, k2, kb2 = jax.random.split(key, 5)

    x = jax.random.normal(kx, (batch, input_size), dtype=jnp.float32)

    # Deterministic parameter init (Kaiming-uniform-ish bounds like nn.Linear).
    bound1 = 1.0 / (input_size ** 0.5)
    w1 = jax.random.uniform(k1, (input_size, hidden_size), jnp.float32,
                            -bound1, bound1)
    b1 = jax.random.uniform(kb1, (hidden_size,), jnp.float32, -bound1, bound1)

    bound2 = 1.0 / (hidden_size ** 0.5)
    w2 = jax.random.uniform(k2, (hidden_size, num_classes), jnp.float32,
                            -bound2, bound2)
    b2 = jax.random.uniform(kb2, (num_classes,), jnp.float32, -bound2, bound2)

    ref = _reference(x, w1, b1, w2, b2)

    # f32 path (bit-exact accumulation): tb/th chosen so both grid axes > 1 step.
    out = feed_forward_net(x, w1, b1, w2, b2, tb=16, th=128)
    out = jax.block_until_ready(out)
    assert out.shape == (batch, num_classes)
    assert jnp.allclose(out, ref, atol=1e-5, rtol=1e-5), "f32 mismatch vs reference"

    # bf16 weights/activations with f32 accumulation (full-rate MXU path);
    # looser tolerance reflects bf16 input/intermediate rounding.
    out_bf16 = feed_forward_net(x, w1, b1, w2, b2, tb=16, th=128,
                                compute_dtype=jnp.bfloat16)
    out_bf16 = jax.block_until_ready(out_bf16)
    assert out_bf16.shape == (batch, num_classes)
    assert jnp.allclose(out_bf16, ref, atol=5e-2, rtol=5e-2), "bf16 mismatch vs reference"

    print("KERNEL_OK")
</pallas_src>

<mosaic_0001>
module attributes {stable_mosaic.version = 11 : i64} {
  func.func @_ffn_kernel(%arg0: i32, %arg1: i32, %arg2: memref<16x128xf32, #tpu.memory_space<vmem>>, %arg3: memref<128x128xf32, #tpu.memory_space<vmem>>, %arg4: memref<1x128xf32, #tpu.memory_space<vmem>>, %arg5: memref<128x128xf32, #tpu.memory_space<vmem>>, %arg6: memref<1x128xf32, #tpu.memory_space<vmem>>, %arg7: memref<16x128xf32, #tpu.memory_space<vmem>>, %arg8: memref<16x128xf32, #tpu.memory_space<vmem>>) attributes {dimension_semantics = [#tpu.dimension_semantics<parallel>, #tpu.dimension_semantics<arbitrary>], iteration_bounds = array<i64: 2, 2>, scalar_prefetch = 0 : i64, scratch_operands = 1 : i64, tpu.core_type = #tpu.core_type<tc>, window_params = [{transform_indices = @transform_0, window_bounds = array<i64: 16, 128>}, {transform_indices = @transform_1, window_bounds = array<i64: 128, 128>}, {transform_indices = @transform_2, window_bounds = array<i64: 1, 128>}, {transform_indices = @transform_3, window_bounds = array<i64: 128, 128>}, {pipeline_mode = #tpu.pipeline_mode<synchronous>, transform_indices = @transform_4, window_bounds = array<i64: 1, 128>}, {transform_indices = @transform_5, window_bounds = array<i64: 16, 128>}]} {
    %c0_i32 = arith.constant 0 : i32
    %0 = arith.cmpi eq, %arg1, %c0_i32 : i32
    %1 = arith.extui %0 : i1 to i32
    %c0_i32_0 = arith.constant 0 : i32
    %2 = arith.cmpi ne, %1, %c0_i32_0 : i32
    scf.if %2 {
      %cst_15 = arith.constant 0.000000e+00 : f32
      %19 = vector.broadcast %cst_15 : f32 to vector<16x128xf32>
      %c0_16 = arith.constant 0 : index
      %c0_17 = arith.constant 0 : index
      %20 = vector.load %arg8[%c0_16, %c0_17] : memref<16x128xf32, #tpu.memory_space<vmem>>, vector<16x128xf32>
      tpu.vector_store %arg8[%c0_16, %c0_17], %19 {strides = array<i32>} : memref<16x128xf32, #tpu.memory_space<vmem>>, vector<16x128xf32>,
    } else {
    }
    %c0 = arith.constant 0 : index
    %c0_1 = arith.constant 0 : index
    %3 = vector.load %arg2[%c0, %c0_1] : memref<16x128xf32, #tpu.memory_space<vmem>>, vector<16x128xf32>
    %c0_2 = arith.constant 0 : index
    %c0_3 = arith.constant 0 : index
    %4 = vector.load %arg3[%c0_2, %c0_3] : memref<128x128xf32, #tpu.memory_space<vmem>>, vector<128x128xf32>
    %cst = arith.constant dense<0.000000e+00> : vector<16x128xf32>
    %5 = tpu.matmul %3, %4, %cst {dimension_numbers = #tpu.dot_dimension_numbers<[1], [0], [0], [1], [0, 0, 1, 1], [], []>} : vector<16x128xf32>, vector<128x128xf32>, vector<16x128xf32> -> vector<16x128xf32>
    %c0_4 = arith.constant 0 : index
    %c0_5 = arith.constant 0 : index
    %6 = vector.load %arg4[%c0_4, %c0_5] : memref<1x128xf32, #tpu.memory_space<vmem>>, vector<1x128xf32>
    %7 = vector.broadcast %6 : vector<1x128xf32> to vector<16x128xf32>
    %8 = arith.addf %5, %7 : vector<16x128xf32>
    %cst_6 = arith.constant 0.000000e+00 : f32
    %9 = vector.broadcast %cst_6 : f32 to vector<16x128xf32>
    %10 = arith.maximumf %8, %9 : vector<16x128xf32>
    %c0_7 = arith.constant 0 : index
    %c0_8 = arith.constant 0 : index
    %11 = vector.load %arg8[%c0_7, %c0_8] : memref<16x128xf32, #tpu.memory_space<vmem>>, vector<16x128xf32>
    %c0_9 = arith.constant 0 : index
    %c0_10 = arith.constant 0 : index
    %12 = vector.load %arg5[%c0_9, %c0_10] : memref<128x128xf32, #tpu.memory_space<vmem>>, vector<128x128xf32>
    %cst_11 = arith.constant dense<0.000000e+00> : vector<16x128xf32>
    %13 = tpu.matmul %10, %12, %cst_11 {dimension_numbers = #tpu.dot_dimension_numbers<[1], [0], [0], [1], [0, 0, 1, 1], [], []>} : vector<16x128xf32>, vector<128x128xf32>, vector<16x128xf32> -> vector<16x128xf32>
    %14 = arith.addf %11, %13 : vector<16x128xf32>
    %c0_12 = arith.constant 0 : index
    %c0_13 = arith.constant 0 : index
    %15 = vector.load %arg8[%c0_12, %c0_13] : memref<16x128xf32, #tpu.memory_space<vmem>>, vector<16x128xf32>
    tpu.vector_store %arg8[%c0_12, %c0_13], %14 {strides = array<i32>} : memref<16x128xf32, #tpu.memory_space<vmem>>, vector<16x128xf32>,
    %c1_i32 = arith.constant 1 : i32
    %16 = arith.cmpi eq, %arg1, %c1_i32 : i32
    %17 = arith.extui %16 : i1 to i32
    %c0_i32_14 = arith.constant 0 : i32
    %18 = arith.cmpi ne, %17, %c0_i32_14 : i32
    scf.if %18 {
      %c0_15 = arith.constant 0 : index
      %c0_16 = arith.constant 0 : index
      %19 = vector.load %arg8[%c0_15, %c0_16] : memref<16x128xf32, #tpu.memory_space<vmem>>, vector<16x128xf32>
      %c0_17 = arith.constant 0 : index
      %c0_18 = arith.constant 0 : index
      %20 = vector.load %arg6[%c0_17, %c0_18] : memref<1x128xf32, #tpu.memory_space<vmem>>, vector<1x128xf32>
      %21 = vector.broadcast %20 : vector<1x128xf32> to vector<16x128xf32>
      %22 = arith.addf %19, %21 : vector<16x128xf32>
      %c0_19 = arith.constant 0 : index
      %c0_20 = arith.constant 0 : index
      %23 = vector.load %arg7[%c0_19, %c0_20] : memref<16x128xf32, #tpu.memory_space<vmem>>, vector<16x128xf32>
      tpu.vector_store %arg7[%c0_19, %c0_20], %22 {strides = array<i32>} : memref<16x128xf32, #tpu.memory_space<vmem>>, vector<16x128xf32>,
    } else {
    }
    return
  }
  func.func @transform_0(%arg0: i32, %arg1: i32) -> (i32, i32) {
    %c0_i32 = arith.constant 0 : i32
    %c0_i32_0 = arith.constant 0 : i32
    return %arg0, %c0_i32 : i32, i32
  }
  func.func @transform_1(%arg0: i32, %arg1: i32) -> (i32, i32) {
    %c0_i32 = arith.constant 0 : i32
    %c0_i32_0 = arith.constant 0 : i32
    return %c0_i32, %arg1 : i32, i32
  }
  func.func @transform_2(%arg0: i32, %arg1: i32) -> (i32, i32) {
    %c0_i32 = arith.constant 0 : i32
    %c0_i32_0 = arith.constant 0 : i32
    return %c0_i32, %arg1 : i32, i32
  }
  func.func @transform_3(%arg0: i32, %arg1: i32) -> (i32, i32) {
    %c0_i32 = arith.constant 0 : i32
    %c0_i32_0 = arith.constant 0 : i32
    return %arg1, %c0_i32 : i32, i32
  }
  func.func @transform_4(%arg0: i32, %arg1: i32) -> (i32, i32) {
    %c0_i32 = arith.constant 0 : i32
    %c0_i32_0 = arith.constant 0 : i32
    %c0_i32_1 = arith.constant 0 : i32
    return %c0_i32, %c0_i32_0 : i32, i32
  }
  func.func @transform_5(%arg0: i32, %arg1: i32) -> (i32, i32) {
    %c0_i32 = arith.constant 0 : i32
    %c0_i32_0 = arith.constant 0 : i32
    return %arg0, %c0_i32 : i32, i32
  }
}

</mosaic_0001>

<llo_original>
// kernel: tpu_custom_call.1
$region0: #{tpu_custom_call.1}
  #allocation0 [shape = 'u32[]', space=smem, size = 0x4, offset = 0x4, fixed_abs, tag = 'smem constant byte address 0x4 - core index']
  #allocation1 [shape = 'u32[144,128]{1,0:T(1,128)}', space=vmem, size = 0x12000, scoped, tag = 'internal scratch']
  #allocation2 [shape = 'f32[16,128]{1,0:T(8,128)}', space=vmem, size = 0x2000, scoped, tag = 'scratch operand']
  %s0 = inlined_call_operand.hbm [shape: f32[32,128], index: 0, kind: input, shape index: {}]
  %s1 = inlined_call_operand.hbm [shape: f32[128,256], index: 1, kind: input, shape index: {}]
  %s2 = inlined_call_operand.vmem [shape: f32[1,256], index: 2, kind: input, shape index: {}]
  %s3 = inlined_call_operand.hbm [shape: f32[256,128], index: 3, kind: input, shape index: {}]
  %s4 = inlined_call_operand.vmem [shape: f32[1,128], index: 4, kind: input, shape index: {}]
  %s5 = inlined_call_operand.hbm [shape: f32[32,128], index: 5, kind: output, shape index: {}]
  %s6 = sld [smem:[#allocation0]]
  $region73: #{tpu_custom_call.1} parent=0
    _
  %s8 = ssub.s32 1, %s6
  %s9 = scalar_select 0, %s8, %s6
  $region1: #{tpu_custom_call.1} parent=0
    #allocation3 [shape = 'u8[16384]{0}', space=vmem, size = 0x4000, scoped, tag = 'input window, operand 0']
    #allocation4 [shape = 's32[2]{0}', space=sflag, size = 0x8, scoped, tag = 'scoped memory for tpu_custom_call.1']
    #allocation5 [shape = 's32[2]{0}', space=sflag, size = 0x8, scoped, tag = 'scoped memory for tpu_custom_call.1']
    #allocation6 [shape = 'u8[131072]{0}', space=vmem, size = 0x20000, scoped, tag = 'input window, operand 1']
    #allocation7 [shape = 's32[2]{0}', space=sflag, size = 0x8, scoped, tag = 'scoped memory for tpu_custom_call.1']
    #allocation8 [shape = 'u8[131072]{0}', space=vmem, size = 0x20000, scoped, tag = 'input window, operand 3']
    #allocation9 [shape = 'u8[16384]{0}', space=vmem, size = 0x4000, scoped, tag = 'output window, operand 0']
    %10 = vsyncpa [#allocation4], 0
    %s11 = scalar_lea.sflag [#allocation4], 1
    %12 = vsyncpa %s11, 0
    %13 = vsyncpa [#allocation7], 0
    %s14 = scalar_lea.sflag [#allocation7], 1
    %15 = vsyncpa %s14, 0
    %16 = vsyncpa [#allocation5], 0
    %s17 = scalar_lea.sflag [#allocation5], 1
    %18 = vsyncpa %s17, 0
    loop: start=0, step=1, limit=6
    $region2: #{tpu_custom_call.1} parent=1 // loop_pre_header
      _
    $region3: #{tpu_custom_call.1} parent=1 // loop_header
      %s20 = sphi 0, %s24
      %p21 = scmp.ge.s32.totalorder %s20, 6
      %s27 = sphi 0, %s39
      %s28 = sphi 0, %s35
      %s29 = sphi 0, %s27
      %s30 = sphi 0, %s28
      %s31 = sphi 0, %s29
      %s32 = sphi 0, %s30
      %s42 = sphi 0, %s44
      %s45 = sphi 0, %s42
      %s46 = sphi 0, %s45
      %s62 = sphi 0, %s46
      %s68 = sphi 0, %s70
      %s71 = sphi 0, %s68
      %s72 = sphi 0, %s71
      %s88 = sphi 0, %s72
      %s94 = sphi 0, %s96
      %s97 = sphi 0, %s94
      %s98 = sphi 0, %s97
      %s114 = sphi 0, %s98
      %s120 = sphi 0, %s122
      %s123 = sphi 0, %s120
      %s124 = sphi 0, %s123
      %s140 = sphi 0, %s124
      %s144 = sphi 0, %s144
      %s146 = sphi 0, %s144
      %s147 = sphi 0, %s146
      %s161 = sphi 0, %s147
      %s167 = sphi 0, %s169
      %s170 = sphi 0, %s167
      %s171 = sphi 0, %s170
      %s187 = sphi 0, %s171
    $region4: #{tpu_custom_call.1} parent=1 // loop_header_branch
      %23 = sbr.rel (%p21) target = $region8
    $region5: #{tpu_custom_call.1} parent=1 // loop_body
      %s25 = ssub.s32 %s20, 1
      %s26 = ssub.s32 %s20, 2
      %s33 = sadd.s32 1, %s28
      %p34 = scmp.ge.s32.totalorder %s33, 2
      %s35 = scalar_select %p34, 0, %s33
      %s36 = sadd.s32 1, %s27
      %s37 = scalar_select %p34, %s36, %s27
      %p38 = scmp.ge.s32.totalorder %s37, 2
      %s39 = scalar_select %p38, 0, %s37
      %s40 = ssub.s32 %s27, %s39
      %p41 = scmp.eq.s32.totalorder %s40, 0
      %s43 = sadd.s32 %s42, 1
      %s44 = scalar_select %p41, %s42, %s43
      %p47 = pneg %p41
      %p48 = scmp.eq.s32.totalorder %s20, 3
      %p49 = por %p47, %p48
      %p50 = scmp.ne.s32.totalorder %s42, %s45
      %p51 = scmp.eq.s32.totalorder %s20, 0
      %p52 = por %p50, %p51
      %p53 = scmp.ne.s32.totalorder %s42, %s45
      %p54 = scmp.eq.s32.totalorder %s25, 3
      %p55 = por %p53, %p54
      %p56 = scmp.ne.s32.totalorder %s45, %s46
      %p57 = scmp.eq.s32.totalorder %s25, 0
      %p58 = por %p56, %p57
      %p59 = scmp.ne.s32.totalorder %s45, %s46
      %p60 = scmp.eq.s32.totalorder %s26, 3
      %p61 = por %p59, %p60
      %p63 = scmp.ne.s32.totalorder %s46, %s62
      %p64 = scmp.eq.s32.totalorder %s26, 0
      %p65 = por %p63, %p64
      %s66 = ssub.s32 %s28, %s35
      %p67 = scmp.eq.s32.totalorder %s66, 0
      %s69 = sadd.s32 %s68, 1
      %s70 = scalar_select %p67, %s68, %s69
      %p73 = pneg %p67
      %p74 = scmp.eq.s32.totalorder %s20, 3
      %p75 = por %p73, %p74
      %p76 = scmp.ne.s32.totalorder %s68, %s71
      %p77 = scmp.eq.s32.totalorder %s20, 0
      %p78 = por %p76, %p77
      %p79 = scmp.ne.s32.totalorder %s68, %s71
      %p80 = scmp.eq.s32.totalorder %s25, 3
      %p81 = por %p79, %p80
      %p82 = scmp.ne.s32.totalorder %s71, %s72
      %p83 = scmp.eq.s32.totalorder %s25, 0
      %p84 = por %p82, %p83
      %p85 = scmp.ne.s32.totalorder %s71, %s72
      %p86 = scmp.eq.s32.totalorder %s26, 3
      %p87 = por %p85, %p86
      %p89 = scmp.ne.s32.totalorder %s72, %s88
      %p90 = scmp.eq.s32.totalorder %s26, 0
      %p91 = por %p89, %p90
      %s92 = ssub.s32 %s28, %s35
      %p93 = scmp.eq.s32.totalorder %s92, 0
      %s95 = sadd.s32 %s94, 1
      %s96 = scalar_select %p93, %s94, %s95
      %p99 = pneg %p93
      %p100 = scmp.eq.s32.totalorder %s20, 3
      %p101 = por %p99, %p100
      %p102 = scmp.ne.s32.totalorder %s94, %s97
      %p103 = scmp.eq.s32.totalorder %s20, 0
      %p104 = por %p102, %p103
      %p105 = scmp.ne.s32.totalorder %s94, %s97
      %p106 = scmp.eq.s32.totalorder %s25, 3
      %p107 = por %p105, %p106
      %p108 = scmp.ne.s32.totalorder %s97, %s98
      %p109 = scmp.eq.s32.totalorder %s25, 0
      %p110 = por %p108, %p109
      %p111 = scmp.ne.s32.totalorder %s97, %s98
      %p112 = scmp.eq.s32.totalorder %s26, 3
      %p113 = por %p111, %p112
      %p115 = scmp.ne.s32.totalorder %s98, %s114
      %p116 = scmp.eq.s32.totalorder %s26, 0
      %p117 = por %p115, %p116
      %s118 = ssub.s32 %s28, %s35
      %p119 = scmp.eq.s32.totalorder %s118, 0
      %s121 = sadd.s32 %s120, 1
      %s122 = scalar_select %p119, %s120, %s121
      %p125 = pneg %p119
      %p126 = scmp.eq.s32.totalorder %s20, 3
      %p127 = por %p125, %p126
      %p128 = scmp.ne.s32.totalorder %s120, %s123
      %p129 = scmp.eq.s32.totalorder %s20, 0
      %p130 = por %p128, %p129
      %p131 = scmp.ne.s32.totalorder %s120, %s123
      %p132 = scmp.eq.s32.totalorder %s25, 3
      %p133 = por %p131, %p132
      %p134 = scmp.ne.s32.totalorder %s123, %s124
      %p135 = scmp.eq.s32.totalorder %s25, 0
      %p136 = por %p134, %p135
      %p137 = scmp.ne.s32.totalorder %s123, %s124
      %p138 = scmp.eq.s32.totalorder %s26, 3
      %p139 = por %p137, %p138
      %p141 = scmp.ne.s32.totalorder %s124, %s140
      %p142 = scmp.eq.s32.totalorder %s26, 0
      %p143 = por %p141, %p142
      %s145 = sadd.s32 %s144, 1
      %p148 = scmp.eq.s32.totalorder %s20, 3
      %p149 = scmp.ne.s32.totalorder %s144, %s146
      %p150 = scmp.eq.s32.totalorder %s20, 0
      %p151 = por %p149, %p150
      %p152 = scmp.ne.s32.totalorder %s144, %s146
      %p153 = scmp.eq.s32.totalorder %s25, 3
      %p154 = por %p152, %p153
      %p155 = scmp.ne.s32.totalorder %s146, %s147
      %p156 = scmp.eq.s32.totalorder %s25, 0
      %p157 = por %p155, %p156
      %p158 = scmp.ne.s32.totalorder %s146, %s147
      %p159 = scmp.eq.s32.totalorder %s26, 3
      %p160 = por %p158, %p159
      %p162 = scmp.ne.s32.totalorder %s147, %s161
      %p163 = scmp.eq.s32.totalorder %s26, 0
      %p164 = por %p162, %p163
      %s165 = ssub.s32 %s27, %s39
      %p166 = scmp.eq.s32.totalorder %s165, 0
      %s168 = sadd.s32 %s167, 1
      %s169 = scalar_select %p166, %s167, %s168
      %p172 = pneg %p166
      %p173 = scmp.eq.s32.totalorder %s20, 3
      %p174 = por %p172, %p173
      %p175 = scmp.ne.s32.totalorder %s167, %s170
      %p176 = scmp.eq.s32.totalorder %s20, 0
      %p177 = por %p175, %p176
      %p178 = scmp.ne.s32.totalorder %s167, %s170
      %p179 = scmp.eq.s32.totalorder %s25, 3
      %p180 = por %p178, %p179
      %p181 = scmp.ne.s32.totalorder %s170, %s171
      %p182 = scmp.eq.s32.totalorder %s25, 0
      %p183 = por %p181, %p182
      %p184 = scmp.ne.s32.totalorder %s170, %s171
      %p185 = scmp.eq.s32.totalorder %s26, 3
      %p186 = por %p184, %p185
      %p188 = scmp.ne.s32.totalorder %s171, %s187
      %p189 = scmp.eq.s32.totalorder %s26, 0
      %p190 = por %p188, %p189
      %p191 = scmp.le.s32.totalorder 1, %s20
      %p192 = scmp.lt.s32.totalorder %s20, 5
      %p193 = pnand %p191, %p192
      %p194 = pneg %p193
      // Predicated region
      $region9: #{tpu_custom_call.1} parent=5 // pred_check
        _
      $region10: #{tpu_custom_call.1} parent=5 // pred_check_branch
        %196 = sbr.rel (%p193) target = $region12
      $region11: #{tpu_custom_call.1} parent=5 // pred_region
        %s197 = ssub.s32 %s20, 1
        // Predicated region
        $region13: #{tpu_custom_call.1} parent=11 // pred_check
          %p198 = pneg %p157
        $region14: #{tpu_custom_call.1} parent=11 // pred_check_branch
          %200 = sbr.rel (%p198) target = $region16
        $region15: #{tpu_custom_call.1} parent=11 // pred_region
          _
        $region16: #{tpu_custom_call.1} parent=11 // pred_fallthru
          _
      $region12: #{tpu_custom_call.1} parent=5 // pred_fallthru
        _
      %p201 = scmp.lt.s32.totalorder %s20, 4
      // Predicated region
      $region17: #{tpu_custom_call.1} parent=5 // pred_check
        %p202 = pneg %p201
      $region18: #{tpu_custom_call.1} parent=5 // pred_check_branch
        %204 = sbr.rel (%p202) target = $region20
      $region19: #{tpu_custom_call.1} parent=5 // pred_region
        // Predicated region
        $region21: #{tpu_custom_call.1} parent=19 // pred_check
          %p205 = pneg %p52
        $region22: #{tpu_custom_call.1} parent=19 // pred_check_branch
          %207 = sbr.rel (%p205) target = $region24
        $region23: #{tpu_custom_call.1} parent=19 // pred_region
          %s208 = sand.u32 %s42, 1
          %s209 = scalar_lea.sflag [#allocation4], %s208
          %s210 = sand.u32 %s42, 1
          %s211 = smul.addr %s210, 16
          %s212 = scalar_lea.vmem [#allocation3], %s211
          %s213 = smul.u32 2, %s27
          %s215 = ssub.s32 256, 256
          %216 = vsyncadd %s209, %s215
          %s217 = smul.addr %s213, 128
          %s218 = scalar_lea.hbm %s0, %s217
          %s219 = sshll.u32 %s212, 4
          %s220 = int_to_ptr.vmem [resolvable:$true] %s219
          %225 = dma.hbm_to_vmem [thread:$0]  %s218, 256, %s220, %s209, 128, 128, 8
        $region24: #{tpu_custom_call.1} parent=19 // pred_fallthru
          _
        // Predicated region
        $region25: #{tpu_custom_call.1} parent=19 // pred_check
          %p226 = pneg %p78
        $region26: #{tpu_custom_call.1} parent=19 // pred_check_branch
          %228 = sbr.rel (%p226) target = $region28
        $region27: #{tpu_custom_call.1} parent=19 // pred_region
          %s229 = sand.u32 %s20, 1
          %s230 = scalar_lea.sflag [#allocation7], %s229
          %s231 = sand.u32 %s68, 1
          %s232 = smul.addr %s231, 128
          %s233 = scalar_lea.vmem [#allocation6], %s232
          %s235 = ssub.s32 2048, 2048
          %236 = vsyncadd %s230, %s235
          %s237 = smul.addr %s28, 128
          %s238 = scalar_lea.hbm %s1, %s237
          %s239 = sshll.u32 %s233, 4
          %s240 = int_to_ptr.vmem [resolvable:$true] %s239
          %245 = dma.hbm_to_vmem [thread:$0]  %s238, 2048, %s240, %s230, 256, 128, 8
        $region28: #{tpu_custom_call.1} parent=19 // pred_fallthru
          _
        // Predicated region
        $region29: #{tpu_custom_call.1} parent=19 // pred_check
          %p246 = pneg %p104
        $region30: #{tpu_custom_call.1} parent=19 // pred_check_branch
          %248 = sbr.rel (%p246) target = $region32
        $region31: #{tpu_custom_call.1} parent=19 // pred_region
          %p249 = scmp.lt.s32.totalorder %s28, 1
          %s250 = scalar_select %p249, %s28, 1
          %s251 = scalar_lea.vmem %s2, %s250
        $region32: #{tpu_custom_call.1} parent=19 // pred_fallthru
          _
        // Predicated region
        $region33: #{tpu_custom_call.1} parent=19 // pred_check
          %p252 = pneg %p130
        $region34: #{tpu_custom_call.1} parent=19 // pred_check_branch
          %254 = sbr.rel (%p252) target = $region36
        $region35: #{tpu_custom_call.1} parent=19 // pred_region
          %s255 = sand.u32 %s20, 1
          %s256 = scalar_lea.sflag [#allocation7], %s255
          %s257 = sand.u32 %s120, 1
          %s258 = smul.addr %s257, 128
          %s259 = scalar_lea.vmem [#allocation8], %s258
          %s260 = smul.u32 16, %s28
          %s262 = ssub.s32 2048, 2048
          %263 = vsyncadd %s256, %s262
          %s264 = smul.addr %s260, 128
          %s265 = scalar_lea.hbm %s3, %s264
          %s266 = sshll.u32 %s259, 4
          %s267 = int_to_ptr.vmem [resolvable:$true] %s266
          %272 = dma.hbm_to_vmem [thread:$0]  %s265, 2048, %s267, %s256, 128, 128, 8
        $region36: #{tpu_custom_call.1} parent=19 // pred_fallthru
          _
      $region20: #{tpu_custom_call.1} parent=5 // pred_fallthru
        _
      %p273 = scmp.le.s32.totalorder 1, %s20
      %p274 = scmp.lt.s32.totalorder %s20, 5
      %p275 = pnand %p273, %p274
      %p276 = pneg %p275
      // Predicated region
      $region37: #{tpu_custom_call.1} parent=5 // pred_check
        _
      $region38: #{tpu_custom_call.1} parent=5 // pred_check_branch
        %278 = sbr.rel (%p275) target = $region40
      $region39: #{tpu_custom_call.1} parent=5 // pred_region
        %s279 = ssub.s32 %s20, 1
        %s280 = sand.u32 %s45, 1
        %s281 = scalar_lea.sflag [#allocation4], %s280
        %s282 = sand.u32 %s45, 1
        %s283 = smul.addr %s282, 16
        %s284 = scalar_lea.vmem [#allocation3], %s283
        // Predicated region
        $region41: #{tpu_custom_call.1} parent=39 // pred_check
          %p285 = pneg %p58
        $region42: #{tpu_custom_call.1} parent=39 // pred_check_branch
          %287 = sbr.rel (%p285) target = $region44
        $region43: #{tpu_custom_call.1} parent=39 // pred_region
          %288 = dma.done %s281, 256
        $region44: #{tpu_custom_call.1} parent=39 // pred_fallthru
          _
        %s289 = sand.u32 %s25, 1
        %s290 = scalar_lea.sflag [#allocation7], %s289
        %s291 = sand.u32 %s71, 1
        %s292 = smul.addr %s291, 128
        %s293 = scalar_lea.vmem [#allocation6], %s292
        // Predicated region
        $region45: #{tpu_custom_call.1} parent=39 // pred_check
          %p294 = pneg %p84
        $region46: #{tpu_custom_call.1} parent=39 // pred_check_branch
          %296 = sbr.rel (%p294) target = $region48
        $region47: #{tpu_custom_call.1} parent=39 // pred_region
          %297 = dma.done %s290, 2048
        $region48: #{tpu_custom_call.1} parent=39 // pred_fallthru
          _
        %s298 = sand.u32 %s25, 1
        %s299 = scalar_lea.sflag [#allocation7], %s298
        %s300 = sand.u32 %s123, 1
        %s301 = smul.addr %s300, 128
        %s302 = scalar_lea.vmem [#allocation8], %s301
        // Predicated region
        $region49: #{tpu_custom_call.1} parent=39 // pred_check
          %p303 = pneg %p136
        $region50: #{tpu_custom_call.1} parent=39 // pred_check_branch
          %305 = sbr.rel (%p303) target = $region52
        $region51: #{tpu_custom_call.1} parent=39 // pred_region
          %306 = dma.done %s299, 2048
        $region52: #{tpu_custom_call.1} parent=39 // pred_fallthru
          _
        %s307 = sand.u32 %s45, 1
        %s308 = scalar_lea.sflag [#allocation4], %s307
        %s309 = sand.u32 %s45, 1
        %s310 = smul.addr %s309, 16
        %s311 = scalar_lea.vmem [#allocation3], %s310
        %p312 = pneg %p58
        %p313 = pneg %p55
        %s314 = sand.u32 %s25, 1
        %s315 = scalar_lea.sflag [#allocation7], %s314
        %s316 = sand.u32 %s71, 1
        %s317 = smul.addr %s316, 128
        %s318 = scalar_lea.vmem [#allocation6], %s317
        %p319 = pneg %p84
        %p320 = pneg %p81
        %p321 = scmp.lt.s32.totalorder %s30, 1
        %s322 = scalar_select %p321, %s30, 1
        %s323 = scalar_lea.vmem %s2, %s322
        %p324 = pneg %p110
        %p325 = pneg %p107
        %s326 = sand.u32 %s25, 1
        %s327 = scalar_lea.sflag [#allocation7], %s326
        %s328 = sand.u32 %s123, 1
        %s329 = smul.addr %s328, 128
        %s330 = scalar_lea.vmem [#allocation8], %s329
        %p331 = pneg %p136
        %p332 = pneg %p133
        %p333 = pneg %p157
        %p334 = pneg %p154
        %p335 = pneg %p183
        %p336 = pneg %p180
        %s337 = sand.u32 %s170, 1
        %s338 = scalar_lea.sflag [#allocation5], %s337
        %s339 = sand.u32 %s170, 1
        %s340 = smul.addr %s339, 16
        %s341 = scalar_lea.vmem [#allocation9], %s340
        %s342 = smul.u32 2, %s29
        %p343 = scmp.lt.s32.totalorder %s30, 1
        %s344 = scalar_select %p343, %s30, 1
        %s345 = scalar_lea.vmem %s2, %s344
        %s346 = smul.u32 16, %s30
        %s347 = smul.u32 2, %s29
        %p348 = scmp.eq.s32.totalorder %s30, 0
        // Predicated region
        $region53: #{tpu_custom_call.1} parent=39 // pred_check
          %p349 = pneg %p348
        $region54: #{tpu_custom_call.1} parent=39 // pred_check_branch
          %351 = sbr.rel (%p349) target = $region56
        $region55: #{tpu_custom_call.1} parent=39 // pred_region
          %352 = vst [vmem:[#allocation2] sm:$0xff] 0.0
          %353 = vst [vmem:[#allocation2 + $0x8] sm:$0xff] 0.0
        $region56: #{tpu_custom_call.1} parent=39 // pred_fallthru
          _
        %v354 = vld [vmem:[%s284] sm:$0xff]
        %v355 = vld [vmem:[%s284 + $0x8] sm:$0xff]
        %v356 = vld [vmem:[%s293] sm:$0xff]
        %v357 = vld [vmem:[%s293 + $0x8] sm:$0xff]
        %v358 = vld [vmem:[%s293 + $0x10] sm:$0xff]
        %v359 = vld [vmem:[%s293 + $0x18] sm:$0xff]
        %v360 = vld [vmem:[%s293 + $0x20] sm:$0xff]
        %v361 = vld [vmem:[%s293 + $0x28] sm:$0xff]
        %v362 = vld [vmem:[%s293 + $0x30] sm:$0xff]
        %v363 = vld [vmem:[%s293 + $0x38] sm:$0xff]
        %v364 = vld [vmem:[%s293 + $0x40] sm:$0xff]
        %v365 = vld [vmem:[%s293 + $0x48] sm:$0xff]
        %v366 = vld [vmem:[%s293 + $0x50] sm:$0xff]
        %v367 = vld [vmem:[%s293 + $0x58] sm:$0xff]
        %v368 = vld [vmem:[%s293 + $0x60] sm:$0xff]
        %v369 = vld [vmem:[%s293 + $0x68] sm:$0xff]
        %v370 = vld [vmem:[%s293 + $0x70] sm:$0xff]
        %v371 = vld [vmem:[%s293 + $0x78] sm:$0xff]
        %v372 = vld [vmem:[%s345] sm:$0x1]
        %v374 = vlaneseq
        %v375 = vshrl.u32 %v374, 7
        %v376 = vsub.s32 0, %v375
        %v377 = vrot.slane %v372, %v376
        %379 = vmatprep.subr.mxu0 0.0
        %380 = vmatpush1.msra.mxu0 %v371
        %381 = vmatprep.subr.mxu0 0.0
        %382 = vmatpush1.msra.mxu0 %v370
        %383 = vmatprep.subr.mxu0 0.0
        %384 = vmatpush1.msra.mxu0 %v369
        %385 = vmatprep.subr.mxu0 0.0
        %386 = vmatpush1.msra.mxu0 %v368
        %387 = vmatprep.subr.mxu0 0.0
        %388 = vmatpush1.msra.mxu0 %v367
        %389 = vmatprep.subr.mxu0 0.0
        %390 = vmatpush1.msra.mxu0 %v366
        %391 = vmatprep.subr.mxu0 0.0
        %392 = vmatpush1.msra.mxu0 %v365
        %393 = vmatprep.subr.mxu0 0.0
        %394 = vmatpush1.msra.mxu0 %v364
        %395 = vmatprep.subr.mxu0 0.0
        %396 = vmatpush1.msra.mxu0 %v363
        %397 = vmatprep.subr.mxu0 0.0
        %398 = vmatpush1.msra.mxu0 %v362
        %399 = vmatprep.subr.mxu0 0.0
        %400 = vmatpush1.msra.mxu0 %v361
        %401 = vmatprep.subr.mxu0 0.0
        %402 = vmatpush1.msra.mxu0 %v360
        %403 = vmatprep.subr.mxu0 0.0
        %404 = vmatpush1.msra.mxu0 %v359
        %405 = vmatprep.subr.mxu0 0.0
        %406 = vmatpush1.msra.mxu0 %v358
        %407 = vmatprep.subr.mxu0 0.0
        %408 = vmatpush1.msra.mxu0 %v357
        %409 = vmatprep.subr.mxu0 0.0
        %410 = vmatpush1.msra.mxu0 %v356
        %411 = vmatprep.subr.mxu0 0.0
        %412 = vmatpush2.msra.mxu0 0.0
        %413 = vmatprep.subr.mxu0 0.0
        %414 = vmatpush2.msra.mxu0 0.0
        %415 = vmatprep.subr.mxu0 0.0
        %416 = vmatpush2.msra.mxu0 0.0
        %417 = vmatprep.subr.mxu0 0.0
        %418 = vmatpush2.msra.mxu0 0.0
        %419 = vmatprep.subr.mxu0 0.0
        %420 = vmatpush2.msra.mxu0 0.0
        %421 = vmatprep.subr.mxu0 0.0
        %422 = vmatpush2.msra.mxu0 0.0
        %423 = vmatprep.subr.mxu0 0.0
        %424 = vmatpush2.msra.mxu0 0.0
        %425 = vmatprep.subr.mxu0 0.0
        %426 = vmatpush2.msra.mxu0 0.0
        %427 = vmatprep.subr.mxu0 0.0
        %428 = vmatpush2.msra.mxu0 0.0
        %429 = vmatprep.subr.mxu0 0.0
        %430 = vmatpush2.msra.mxu0 0.0
        %431 = vmatprep.subr.mxu0 0.0
        %432 = vmatpush2.msra.mxu0 0.0
        %433 = vmatprep.subr.mxu0 0.0
        %434 = vmatpush2.msra.mxu0 0.0
        %435 = vmatprep.subr.mxu0 0.0
        %436 = vmatpush2.msra.mxu0 0.0
        %437 = vmatprep.subr.mxu0 0.0
        %438 = vmatpush2.msra.mxu0 0.0
        %439 = vmatprep.subr.mxu0 0.0
        %440 = vmatpush2.msra.mxu0 0.0
        %441 = vmatprep.subr.mxu0 0.0
        %442 = vmatpush2.msra.mxu0 0.0
        %443 = vmatprep.mubr.f32.mxu0 0.0
        %444 = vmatmul.mubr.f32.gmra.mxu0 %v354
        %v445 = vpop.f32.mrf.mxu0
        %v446 = vadd.f32 %v377, %v445
        %v447 = vpop.f32.mrf.mxu0
        %448 = vmatprep.mubr.f32.mxu0 0.0
        %449 = vmatmul.mubr.f32.gmra.mxu0 %v355
        %v450 = vpop.f32.mrf.mxu0
        %v451 = vadd.f32 %v377, %v450
        %v452 = vpop.f32.mrf.mxu0
        %453 = vdwg.mxu0
        %v454 = vmax.f32 %v446, 0.0
        %v455 = vmax.f32 %v451, 0.0
        %v456 = vld [vmem:[#allocation2] sm:$0xff]
        %v457 = vld [vmem:[#allocation2 + $0x8] sm:$0xff]
        %v458 = vld [vmem:[%s302] sm:$0xff]
        %v459 = vld [vmem:[%s302 + $0x8] sm:$0xff]
        %v460 = vld [vmem:[%s302 + $0x10] sm:$0xff]
        %v461 = vld [vmem:[%s302 + $0x18] sm:$0xff]
        %v462 = vld [vmem:[%s302 + $0x20] sm:$0xff]
        %v463 = vld [vmem:[%s302 + $0x28] sm:$0xff]
        %v464 = vld [vmem:[%s302 + $0x30] sm:$0xff]
        %v465 = vld [vmem:[%s302 + $0x38] sm:$0xff]
        %v466 = vld [vmem:[%s302 + $0x40] sm:$0xff]
        %v467 = vld [vmem:[%s302 + $0x48] sm:$0xff]
        %v468 = vld [vmem:[%s302 + $0x50] sm:$0xff]
        %v469 = vld [vmem:[%s302 + $0x58] sm:$0xff]
        %v470 = vld [vmem:[%s302 + $0x60] sm:$0xff]
        %v471 = vld [vmem:[%s302 + $0x68] sm:$0xff]
        %v472 = vld [vmem:[%s302 + $0x70] sm:$0xff]
        %v473 = vld [vmem:[%s302 + $0x78] sm:$0xff]
        %474 = vmatprep.subr.mxu0 0.0
        %475 = vmatpush1.msra.mxu0 %v473
        %476 = vmatprep.subr.mxu0 0.0
        %477 = vmatpush1.msra.mxu0 %v472
        %478 = vmatprep.subr.mxu0 0.0
        %479 = vmatpush1.msra.mxu0 %v471
        %480 = vmatprep.subr.mxu0 0.0
        %481 = vmatpush1.msra.mxu0 %v470
        %482 = vmatprep.subr.mxu0 0.0
        %483 = vmatpush1.msra.mxu0 %v469
        %484 = vmatprep.subr.mxu0 0.0
        %485 = vmatpush1.msra.mxu0 %v468
        %486 = vmatprep.subr.mxu0 0.0
        %487 = vmatpush1.msra.mxu0 %v467
        %488 = vmatprep.subr.mxu0 0.0
        %489 = vmatpush1.msra.mxu0 %v466
        %490 = vmatprep.subr.mxu0 0.0
        %491 = vmatpush1.msra.mxu0 %v465
        %492 = vmatprep.subr.mxu0 0.0
        %493 = vmatpush1.msra.mxu0 %v464
        %494 = vmatprep.subr.mxu0 0.0
        %495 = vmatpush1.msra.mxu0 %v463
        %496 = vmatprep.subr.mxu0 0.0
        %497 = vmatpush1.msra.mxu0 %v462
        %498 = vmatprep.subr.mxu0 0.0
        %499 = vmatpush1.msra.mxu0 %v461
        %500 = vmatprep.subr.mxu0 0.0
        %501 = vmatpush1.msra.mxu0 %v460
        %502 = vmatprep.subr.mxu0 0.0
        %503 = vmatpush1.msra.mxu0 %v459
        %504 = vmatprep.subr.mxu0 0.0
        %505 = vmatpush1.msra.mxu0 %v458
        %506 = vmatprep.subr.mxu0 0.0
        %507 = vmatpush2.msra.mxu0 0.0
        %508 = vmatprep.subr.mxu0 0.0
        %509 = vmatpush2.msra.mxu0 0.0
        %510 = vmatprep.subr.mxu0 0.0
        %511 = vmatpush2.msra.mxu0 0.0
        %512 = vmatprep.subr.mxu0 0.0
        %513 = vmatpush2.msra.mxu0 0.0
        %514 = vmatprep.subr.mxu0 0.0
        %515 = vmatpush2.msra.mxu0 0.0
        %516 = vmatprep.subr.mxu0 0.0
        %517 = vmatpush2.msra.mxu0 0.0
        %518 = vmatprep.subr.mxu0 0.0
        %519 = vmatpush2.msra.mxu0 0.0
        %520 = vmatprep.subr.mxu0 0.0
        %521 = vmatpush2.msra.mxu0 0.0
        %522 = vmatprep.subr.mxu0 0.0
        %523 = vmatpush2.msra.mxu0 0.0
        %524 = vmatprep.subr.mxu0 0.0
        %525 = vmatpush2.msra.mxu0 0.0
        %526 = vmatprep.subr.mxu0 0.0
        %527 = vmatpush2.msra.mxu0 0.0
        %528 = vmatprep.subr.mxu0 0.0
        %529 = vmatpush2.msra.mxu0 0.0
        %530 = vmatprep.subr.mxu0 0.0
        %531 = vmatpush2.msra.mxu0 0.0
        %532 = vmatprep.subr.mxu0 0.0
        %533 = vmatpush2.msra.mxu0 0.0
        %534 = vmatprep.subr.mxu0 0.0
        %535 = vmatpush2.msra.mxu0 0.0
        %536 = vmatprep.subr.mxu0 0.0
        %537 = vmatpush2.msra.mxu0 0.0
        %538 = vmatprep.mubr.f32.mxu0 0.0
        %539 = vmatmul.mubr.f32.gmra.mxu0 %v454
        %v540 = vpop.f32.mrf.mxu0
        %v541 = vadd.f32 0.0, %v540
        %v542 = vpop.f32.mrf.mxu0
        %543 = vmatprep.mubr.f32.mxu0 0.0
        %544 = vmatmul.mubr.f32.gmra.mxu0 %v455
        %v545 = vpop.f32.mrf.mxu0
        %v546 = vadd.f32 0.0, %v545
        %v547 = vpop.f32.mrf.mxu0
        %548 = vdwg.mxu0
        %v549 = vadd.f32 %v456, %v541
        %v550 = vadd.f32 %v457, %v546
        %551 = vst [vmem:[#allocation2] sm:$0xff] %v549
        %552 = vst [vmem:[#allocation2 + $0x8] sm:$0xff] %v550
        %p553 = scmp.eq.s32.totalorder %s30, 1
        // Predicated region
        $region57: #{tpu_custom_call.1} parent=39 // pred_check
          %p554 = pneg %p553
        $region58: #{tpu_custom_call.1} parent=39 // pred_check_branch
          %556 = sbr.rel (%p554) target = $region60
        $region59: #{tpu_custom_call.1} parent=39 // pred_region
          %v557 = vld [vmem:[#allocation2] sm:$0xff]
          %v558 = vld [vmem:[#allocation2 + $0x8] sm:$0xff]
          %v559 = vld [vmem:[%s4] sm:$0x1]
          %v561 = vlaneseq
          %v562 = vshrl.u32 %v561, 7
          %v563 = vsub.s32 0, %v562
          %v564 = vrot.slane %v559, %v563
          %v566 = vadd.f32 %v557, %v564
          %v567 = vadd.f32 %v558, %v564
          %568 = vst [vmem:[%s341] sm:$0xff] %v566
          %569 = vst [vmem:[%s341 + $0x8] sm:$0xff] %v567
        $region60: #{tpu_custom_call.1} parent=39 // pred_fallthru
          _
        %s570 = sand.u32 %s170, 1
        %s571 = scalar_lea.sflag [#allocation5], %s570
        %s572 = sand.u32 %s170, 1
        %s573 = smul.addr %s572, 16
        %s574 = scalar_lea.vmem [#allocation9], %s573
        // Predicated region
        $region61: #{tpu_custom_call.1} parent=39 // pred_check
          %p575 = pneg %p180
        $region62: #{tpu_custom_call.1} parent=39 // pred_check_branch
          %577 = sbr.rel (%p575) target = $region64
        $region63: #{tpu_custom_call.1} parent=39 // pred_region
          %s578 = smul.u32 2, %s29
          %s580 = ssub.s32 256, 256
          %581 = vsyncadd %s571, %s580
          %s582 = smul.addr %s578, 128
          %s583 = scalar_lea.hbm %s5, %s582
          %s584 = sshll.u32 %s574, 4
          %s585 = int_to_ptr.vmem [resolvable:$true] %s584
          %590 = dma.vmem_to_hbm [thread:$0]  %s585, 256, %s583, %s571, 128, 128, 8
        $region64: #{tpu_custom_call.1} parent=39 // pred_fallthru
          _
      $region40: #{tpu_custom_call.1} parent=5 // pred_fallthru
        _
      %p591 = scmp.le.s32.totalorder 2, %s20
      // Predicated region
      $region65: #{tpu_custom_call.1} parent=5 // pred_check
        %p592 = pneg %p591
      $region66: #{tpu_custom_call.1} parent=5 // pred_check_branch
        %594 = sbr.rel (%p592) target = $region68
      $region67: #{tpu_custom_call.1} parent=5 // pred_region
        %s595 = ssub.s32 %s20, 2
        // Predicated region
        $region69: #{tpu_custom_call.1} parent=67 // pred_check
          %p596 = pneg %p186
        $region70: #{tpu_custom_call.1} parent=67 // pred_check_branch
          %598 = sbr.rel (%p596) target = $region72
        $region71: #{tpu_custom_call.1} parent=67 // pred_region
          %s599 = sand.u32 %s171, 1
          %s600 = scalar_lea.sflag [#allocation5], %s599
          %s601 = sand.u32 %s171, 1
          %s602 = smul.addr %s601, 16
          %s603 = scalar_lea.vmem [#allocation9], %s602
          %604 = dma.done %s600, 256
        $region72: #{tpu_custom_call.1} parent=67 // pred_fallthru
          _
      $region68: #{tpu_custom_call.1} parent=5 // pred_fallthru
        _
    $region6: #{tpu_custom_call.1} parent=1 // loop_footer
      %s24 = sadd.s32 1, %s20
    $region7: #{tpu_custom_call.1} parent=1 // loop_footer_branch
      %19 = sbr.rel target = $region3
    $region8: #{tpu_custom_call.1} parent=1 // loop_exit
      _
    %605 = vsyncpa [#allocation4], 1
    %s606 = scalar_lea.sflag [#allocation4], 1
    %607 = vsyncpa %s606, 1
    %608 = vsyncpa [#allocation7], 1
    %s609 = scalar_lea.sflag [#allocation7], 1
    %610 = vsyncpa %s609, 1
    %611 = vsyncpa [#allocation5], 1
    %s612 = scalar_lea.sflag [#allocation5], 1
    %613 = vsyncpa %s612, 1

</llo_original>
